<compile_context>
chip_gen: v7x
topology: tpu7x:2x2x1
jax: 0.10.0
libtpu: 0.0.40
codegen_flags: <defaults>
</compile_context>

<pallas_src>
import math

import jax
import jax.numpy as jnp
from jax import lax
from jax.experimental import pallas as pl
from jax.experimental.pallas import tpu as pltpu


def _round_up(x, m):
    return ((x + m - 1) // m) * m


def _sublane(dtype):
    itemsize = jnp.dtype(dtype).itemsize
    return {4: 8, 2: 16, 1: 32}.get(itemsize, 8)


# Contract dim 1 of x (K) with dim 1 of w (K) -> w stays in PyTorch (N, K)
# layout and the MXU consumes the transposed RHS directly.
_DN = (((1,), (1,)), ((), ()))


# ---------------------------------------------------------------------------
# Single-pass kernels (whole K in one tile): no scratch accumulator needed.
# ---------------------------------------------------------------------------
def _kernel_single_bias(x_ref, w_ref, b_ref, o_ref):
    acc = lax.dot_general(x_ref[...], w_ref[...], _DN,
                          preferred_element_type=jnp.float32)
    o_ref[...] = (acc + b_ref[...]).astype(o_ref.dtype)


def _kernel_single_nobias(x_ref, w_ref, o_ref):
    acc = lax.dot_general(x_ref[...], w_ref[...], _DN,
                          preferred_element_type=jnp.float32)
    o_ref[...] = acc.astype(o_ref.dtype)


# ---------------------------------------------------------------------------
# Multi-pass kernels (K tiled): f32 VMEM accumulator resident across k.
# ---------------------------------------------------------------------------
def _kernel_multi_bias(x_ref, w_ref, b_ref, o_ref, acc_ref):
    k = pl.program_id(2)

    @pl.when(k == 0)
    def _init():
        acc_ref[...] = jnp.zeros_like(acc_ref)

    acc_ref[...] += lax.dot_general(x_ref[...], w_ref[...], _DN,
                                    preferred_element_type=jnp.float32)

    @pl.when(k == pl.num_programs(2) - 1)
    def _finalize():
        o_ref[...] = (acc_ref[...] + b_ref[...]).astype(o_ref.dtype)


def _kernel_multi_nobias(x_ref, w_ref, o_ref, acc_ref):
    k = pl.program_id(2)

    @pl.when(k == 0)
    def _init():
        acc_ref[...] = jnp.zeros_like(acc_ref)

    acc_ref[...] += lax.dot_general(x_ref[...], w_ref[...], _DN,
                                    preferred_element_type=jnp.float32)

    @pl.when(k == pl.num_programs(2) - 1)
    def _finalize():
        o_ref[...] = acc_ref[...].astype(o_ref.dtype)


@jax.jit
def linear_pallas(x, weight, bias=None):
    """Equivalent of torch.nn.functional.linear(x, weight, bias).

    x:      (..., in_features)
    weight: (out_features, in_features)   -- PyTorch convention, NOT transposed
    bias:   (out_features,) or None
    """
    orig_dtype = x.dtype
    K = x.shape[-1]
    N, Kw = weight.shape
    assert Kw == K, f"weight in_features {Kw} != x last dim {K}"
    lead_shape = x.shape[:-1]
    M = math.prod(lead_shape) if lead_shape else 1
    x2d = x.reshape(M, K)

    sub = _sublane(orig_dtype)

    # --- tile sizes (MXU / lane aligned, unmasked after wrapper padding) ----
    k128 = _round_up(K, 128)
    single_pass = k128 <= 1024          # whole K in one tile -> no reduction axis
    tk = k128 if single_pass else 512

    if M >= 512 and M % 512 == 0:
        tm = 512
    elif M >= 256:
        tm = 256
    else:
        tm = _round_up(max(M, 1), sub)
    tn = 256 if N >= 256 else _round_up(N, 128)

    pM = _round_up(M, tm)
    pN = _round_up(N, tn)
    pK = _round_up(K, tk)

    # Zero-pad ragged dims (no-op when already aligned) so every grid step is
    # the fast unmasked load/store path; K-padding with zeros is exact for the
    # contraction.
    if (pM, pK) != (M, K):
        x2d = jnp.pad(x2d, ((0, pM - M), (0, pK - K)))
    w_p = weight
    if (pN, pK) != (N, K):
        w_p = jnp.pad(weight, ((0, pN - N), (0, pK - K)))

    has_bias = bias is not None
    if has_bias:
        # Bias stays float32 and is added to the f32 accumulator.
        b2d = bias.astype(jnp.float32).reshape(1, N)
        if pN != N:
            b2d = jnp.pad(b2d, ((0, 0), (0, pN - N)))

    bytes_accessed = (
        pM * pK * x2d.dtype.itemsize
        + pN * pK * w_p.dtype.itemsize
        + pM * pN * jnp.dtype(orig_dtype).itemsize
    )
    cost = pl.CostEstimate(
        flops=2 * pM * pN * pK,
        transcendentals=0,
        bytes_accessed=bytes_accessed,
    )

    if single_pass:
        grid = (pM // tm, pN // tn)
        x_spec = pl.BlockSpec((tm, tk), lambda i, j: (i, 0))
        w_spec = pl.BlockSpec((tn, tk), lambda i, j: (j, 0))
        o_spec = pl.BlockSpec((tm, tn), lambda i, j: (i, j))
        cparams = pltpu.CompilerParams(
            dimension_semantics=("parallel", "parallel"))
        if has_bias:
            b_spec = pl.BlockSpec((1, tn), lambda i, j: (0, j))
            out2d = pl.pallas_call(
                _kernel_single_bias,
                out_shape=jax.ShapeDtypeStruct((pM, pN), orig_dtype),
                grid_spec=pltpu.PrefetchScalarGridSpec(
                    num_scalar_prefetch=0,
                    grid=grid,
                    in_specs=[x_spec, w_spec, b_spec],
                    out_specs=o_spec,
                ),
                compiler_params=cparams,
                cost_estimate=cost,
            )(x2d, w_p, b2d)
        else:
            out2d = pl.pallas_call(
                _kernel_single_nobias,
                out_shape=jax.ShapeDtypeStruct((pM, pN), orig_dtype),
                grid_spec=pltpu.PrefetchScalarGridSpec(
                    num_scalar_prefetch=0,
                    grid=grid,
                    in_specs=[x_spec, w_spec],
                    out_specs=o_spec,
                ),
                compiler_params=cparams,
                cost_estimate=cost,
            )(x2d, w_p)
    else:
        grid = (pM // tm, pN // tn, pK // tk)
        x_spec = pl.BlockSpec((tm, tk), lambda i, j, k: (i, k))
        w_spec = pl.BlockSpec((tn, tk), lambda i, j, k: (j, k))
        o_spec = pl.BlockSpec((tm, tn), lambda i, j, k: (i, j))
        scratch = [pltpu.VMEM((tm, tn), jnp.float32)]
        cparams = pltpu.CompilerParams(
            # M/N shard across TensorCores (v7x megacore); K is the sequential
            # reduction axis with the resident accumulator.
            dimension_semantics=("parallel", "parallel", "arbitrary"))
        if has_bias:
            b_spec = pl.BlockSpec((1, tn), lambda i, j, k: (0, j))
            out2d = pl.pallas_call(
                _kernel_multi_bias,
                out_shape=jax.ShapeDtypeStruct((pM, pN), orig_dtype),
                grid_spec=pltpu.PrefetchScalarGridSpec(
                    num_scalar_prefetch=0,
                    grid=grid,
                    in_specs=[x_spec, w_spec, b_spec],
                    out_specs=o_spec,
                    scratch_shapes=scratch,
                ),
                compiler_params=cparams,
                cost_estimate=cost,
            )(x2d, w_p, b2d)
        else:
            out2d = pl.pallas_call(
                _kernel_multi_nobias,
                out_shape=jax.ShapeDtypeStruct((pM, pN), orig_dtype),
                grid_spec=pltpu.PrefetchScalarGridSpec(
                    num_scalar_prefetch=0,
                    grid=grid,
                    in_specs=[x_spec, w_spec],
                    out_specs=o_spec,
                    scratch_shapes=scratch,
                ),
                compiler_params=cparams,
                cost_estimate=cost,
            )(x2d, w_p)

    out2d = out2d[:M, :N]
    return out2d.reshape(*lead_shape, N)


def init_linear_params(key, in_features, out_features, dtype=jnp.float32):
    # Deterministic init standing in for `g_init_fn` (undefined in the source);
    # Kaiming-uniform-like weight init + PyTorch default bias init.
    kw, kb = jax.random.split(key)
    bound_w = (6.0 / in_features) ** 0.5
    weight = jax.random.uniform(
        kw, (out_features, in_features), dtype, minval=-bound_w, maxval=bound_w
    )
    bound_b = 1.0 / (in_features ** 0.5)
    bias = jax.random.uniform(
        kb, (out_features,), dtype, minval=-bound_b, maxval=bound_b
    )
    return weight, bias


if __name__ == "__main__":
    key = jax.random.PRNGKey(0)
    k_x, k_p = jax.random.split(key)

    batch, seq, in_features, out_features = 2, 8, 32, 64
    x = jax.random.normal(k_x, (batch, seq, in_features), dtype=jnp.float32)
    weight, bias = init_linear_params(k_p, in_features, out_features)

    # With-bias path (single-pass kernel at these shapes).
    y = linear_pallas(x, weight, bias)
    jax.block_until_ready(y)
    y_ref = x @ weight.T + bias
    assert y.shape == (batch, seq, out_features)
    assert jnp.allclose(y, y_ref, atol=2e-3, rtol=2e-3), float(
        jnp.max(jnp.abs(y - y_ref))
    )

    # No-bias path (static variant, no zeros bias materialized).
    y_nb = linear_pallas(x, weight, None)
    jax.block_until_ready(y_nb)
    y_nb_ref = x @ weight.T
    assert jnp.allclose(y_nb, y_nb_ref, atol=2e-3, rtol=2e-3), float(
        jnp.max(jnp.abs(y_nb - y_nb_ref))
    )

    # Exercise the multi-pass (K-tiled, f32 accumulator) path as well.
    K_big, N_big, M_big = 1536, 384, 64
    kx2, kp2 = jax.random.split(k_p)
    x_big = jax.random.normal(kx2, (M_big, K_big), dtype=jnp.float32)
    w_big, b_big = init_linear_params(kp2, K_big, N_big)
    y_big = linear_pallas(x_big, w_big, b_big)
    jax.block_until_ready(y_big)
    y_big_ref = x_big @ w_big.T + b_big
    assert jnp.allclose(y_big, y_big_ref, atol=5e-3, rtol=5e-3), float(
        jnp.max(jnp.abs(y_big - y_big_ref))
    )

    print("KERNEL_OK")
</pallas_src>

<mosaic_0001>
module attributes {stable_mosaic.version = 11 : i64} {
  func.func @_kernel_single_bias(%arg0: i32, %arg1: i32, %arg2: memref<16x128xf32, #tpu.memory_space<vmem>>, %arg3: memref<128x128xf32, #tpu.memory_space<vmem>>, %arg4: memref<1x128xf32, #tpu.memory_space<vmem>>, %arg5: memref<16x128xf32, #tpu.memory_space<vmem>>) attributes {dimension_semantics = [#tpu.dimension_semantics<parallel>, #tpu.dimension_semantics<parallel>], iteration_bounds = array<i64: 1, 1>, scalar_prefetch = 0 : i64, scratch_operands = 0 : i64, tpu.core_type = #tpu.core_type<tc>, window_params = [{transform_indices = @transform_0, window_bounds = array<i64: 16, 128>}, {transform_indices = @transform_1, window_bounds = array<i64: 128, 128>}, {transform_indices = @transform_2, window_bounds = array<i64: 1, 128>}, {transform_indices = @transform_3, window_bounds = array<i64: 16, 128>}]} {
    %c0 = arith.constant 0 : index
    %c0_0 = arith.constant 0 : index
    %0 = vector.load %arg2[%c0, %c0_0] : memref<16x128xf32, #tpu.memory_space<vmem>>, vector<16x128xf32>
    %c0_1 = arith.constant 0 : index
    %c0_2 = arith.constant 0 : index
    %1 = vector.load %arg3[%c0_1, %c0_2] : memref<128x128xf32, #tpu.memory_space<vmem>>, vector<128x128xf32>
    %cst = arith.constant dense<0.000000e+00> : vector<16x128xf32>
    %2 = tpu.matmul %0, %1, %cst {dimension_numbers = #tpu.dot_dimension_numbers<[1], [1], [0], [0], [0, 0, 1, 0], [], []>} : vector<16x128xf32>, vector<128x128xf32>, vector<16x128xf32> -> vector<16x128xf32>
    %c0_3 = arith.constant 0 : index
    %c0_4 = arith.constant 0 : index
    %3 = vector.load %arg4[%c0_3, %c0_4] : memref<1x128xf32, #tpu.memory_space<vmem>>, vector<1x128xf32>
    %4 = vector.broadcast %3 : vector<1x128xf32> to vector<16x128xf32>
    %5 = arith.addf %2, %4 : vector<16x128xf32>
    %c0_5 = arith.constant 0 : index
    %c0_6 = arith.constant 0 : index
    %6 = vector.load %arg5[%c0_5, %c0_6] : memref<16x128xf32, #tpu.memory_space<vmem>>, vector<16x128xf32>
    tpu.vector_store %arg5[%c0_5, %c0_6], %5 {strides = array<i32>} : memref<16x128xf32, #tpu.memory_space<vmem>>, vector<16x128xf32>,
    return
  }
  func.func @transform_0(%arg0: i32, %arg1: i32) -> (i32, i32) {
    %c0_i32 = arith.constant 0 : i32
    %c0_i32_0 = arith.constant 0 : i32
    return %arg0, %c0_i32 : i32, i32
  }
  func.func @transform_1(%arg0: i32, %arg1: i32) -> (i32, i32) {
    %c0_i32 = arith.constant 0 : i32
    %c0_i32_0 = arith.constant 0 : i32
    return %arg1, %c0_i32 : i32, i32
  }
  func.func @transform_2(%arg0: i32, %arg1: i32) -> (i32, i32) {
    %c0_i32 = arith.constant 0 : i32
    %c0_i32_0 = arith.constant 0 : i32
    return %c0_i32, %arg1 : i32, i32
  }
  func.func @transform_3(%arg0: i32, %arg1: i32) -> (i32, i32) {
    %c0_i32 = arith.constant 0 : i32
    return %arg0, %arg1 : i32, i32
  }
}

</mosaic_0001>

<llo_original>
// kernel: linear_pallas.1
$region0: #{linear_pallas.1}
  #allocation0 [shape = 'u32[]', space=smem, size = 0x4, offset = 0x4, fixed_abs, tag = 'smem constant byte address 0x4 - core index']
  #allocation1 [shape = 'u32[144,128]{1,0:T(1,128)}', space=vmem, size = 0x12000, scoped, tag = 'internal scratch']
  %s0 = inlined_call_operand.vmem [shape: f32[16,128], index: 0, kind: input, shape index: {}]
  %s1 = inlined_call_operand.vmem [shape: f32[128,128], index: 1, kind: input, shape index: {}]
  %s2 = inlined_call_operand.vmem [shape: f32[1,128], index: 2, kind: input, shape index: {}]
  %s3 = inlined_call_operand.vmem [shape: f32[16,128], index: 3, kind: output, shape index: {}]
  %s4 = sld [smem:[#allocation0]]
  $region22: #{linear_pallas.1} parent=0
    _
  %s6 = ssub.s32 1, %s4
  %s7 = scalar_select 0, %s6, %s4
  // Predicated region
  $region2: #{linear_pallas.1} parent=0 // pred_check
    _
  $region3: #{linear_pallas.1} parent=0 // pred_check_branch
    %9 = sbr.rel (0) target = $region5
  $region4: #{linear_pallas.1} parent=0 // pred_region
    _
  $region5: #{linear_pallas.1} parent=0 // pred_fallthru
    _
  // Predicated region
  $region6: #{linear_pallas.1} parent=0 // pred_check
    _
  $region7: #{linear_pallas.1} parent=0 // pred_check_branch
    %11 = sbr.rel (0) target = $region9
  $region8: #{linear_pallas.1} parent=0 // pred_region
    _
  $region9: #{linear_pallas.1} parent=0 // pred_fallthru
    _
  // Predicated region
  $region10: #{linear_pallas.1} parent=0 // pred_check
    _
  $region11: #{linear_pallas.1} parent=0 // pred_check_branch
    %13 = sbr.rel (0) target = $region13
  $region12: #{linear_pallas.1} parent=0 // pred_region
    _
  $region13: #{linear_pallas.1} parent=0 // pred_fallthru
    _
  %v14 = vld [vmem:[%s0] sm:$0xff]
  %v15 = vld [vmem:[%s0 + $0x8] sm:$0xff]
  %v16 = vld [vmem:[%s1] sm:$0xff]
  %v17 = vld [vmem:[%s1 + $0x8] sm:$0xff]
  %v18 = vld [vmem:[%s1 + $0x10] sm:$0xff]
  %v19 = vld [vmem:[%s1 + $0x18] sm:$0xff]
  %v20 = vld [vmem:[%s1 + $0x20] sm:$0xff]
  %v21 = vld [vmem:[%s1 + $0x28] sm:$0xff]
  %v22 = vld [vmem:[%s1 + $0x30] sm:$0xff]
  %v23 = vld [vmem:[%s1 + $0x38] sm:$0xff]
  %v24 = vld [vmem:[%s1 + $0x40] sm:$0xff]
  %v25 = vld [vmem:[%s1 + $0x48] sm:$0xff]
  %v26 = vld [vmem:[%s1 + $0x50] sm:$0xff]
  %v27 = vld [vmem:[%s1 + $0x58] sm:$0xff]
  %v28 = vld [vmem:[%s1 + $0x60] sm:$0xff]
  %v29 = vld [vmem:[%s1 + $0x68] sm:$0xff]
  %v30 = vld [vmem:[%s1 + $0x70] sm:$0xff]
  %v31 = vld [vmem:[%s1 + $0x78] sm:$0xff]
  %v32 = vld [vmem:[%s2] sm:$0x1]
  %v34 = vlaneseq
  %v35 = vshrl.u32 %v34, 7
  %v36 = vsub.s32 0, %v35
  %v37 = vrot.slane %v32, %v36
  %39 = vmatprep.subr.mxu0 0.0
  %40 = vmatpush1.xpose.msra.mxu0 %v16
  %41 = vmatprep.subr.mxu0 0.0
  %42 = vmatpush1.xpose.msra.mxu0 %v17
  %43 = vmatprep.subr.mxu0 0.0
  %44 = vmatpush1.xpose.msra.mxu0 %v18
  %45 = vmatprep.subr.mxu0 0.0
  %46 = vmatpush1.xpose.msra.mxu0 %v19
  %47 = vmatprep.subr.mxu0 0.0
  %48 = vmatpush1.xpose.msra.mxu0 %v20
  %49 = vmatprep.subr.mxu0 0.0
  %50 = vmatpush1.xpose.msra.mxu0 %v21
  %51 = vmatprep.subr.mxu0 0.0
  %52 = vmatpush1.xpose.msra.mxu0 %v22
  %53 = vmatprep.subr.mxu0 0.0
  %54 = vmatpush1.xpose.msra.mxu0 %v23
  %55 = vmatprep.subr.mxu0 0.0
  %56 = vmatpush1.xpose.msra.mxu0 %v24
  %57 = vmatprep.subr.mxu0 0.0
  %58 = vmatpush1.xpose.msra.mxu0 %v25
  %59 = vmatprep.subr.mxu0 0.0
  %60 = vmatpush1.xpose.msra.mxu0 %v26
  %61 = vmatprep.subr.mxu0 0.0
  %62 = vmatpush1.xpose.msra.mxu0 %v27
  %63 = vmatprep.subr.mxu0 0.0
  %64 = vmatpush1.xpose.msra.mxu0 %v28
  %65 = vmatprep.subr.mxu0 0.0
  %66 = vmatpush1.xpose.msra.mxu0 %v29
  %67 = vmatprep.subr.mxu0 0.0
  %68 = vmatpush1.xpose.msra.mxu0 %v30
  %69 = vmatprep.subr.mxu0 0.0
  %70 = vmatpush1.xpose.msra.mxu0 %v31
  %71 = vmatprep.subr.mxu0 0.0
  %72 = vmatpush1.xpose.msra.mxu0 0.0
  %73 = vmatprep.subr.mxu0 0.0
  %74 = vmatpush1.xpose.msra.mxu0 0.0
  %75 = vmatprep.subr.mxu0 0.0
  %76 = vmatpush1.xpose.msra.mxu0 0.0
  %77 = vmatprep.subr.mxu0 0.0
  %78 = vmatpush1.xpose.msra.mxu0 0.0
  %79 = vmatprep.subr.mxu0 0.0
  %80 = vmatpush1.xpose.msra.mxu0 0.0
  %81 = vmatprep.subr.mxu0 0.0
  %82 = vmatpush1.xpose.msra.mxu0 0.0
  %83 = vmatprep.subr.mxu0 0.0
  %84 = vmatpush1.xpose.msra.mxu0 0.0
  %85 = vmatprep.subr.mxu0 0.0
  %86 = vmatpush1.xpose.msra.mxu0 0.0
  %87 = vmatprep.subr.mxu0 0.0
  %88 = vmatpush1.xpose.msra.mxu0 0.0
  %89 = vmatprep.subr.mxu0 0.0
  %90 = vmatpush1.xpose.msra.mxu0 0.0
  %91 = vmatprep.subr.mxu0 0.0
  %92 = vmatpush1.xpose.msra.mxu0 0.0
  %93 = vmatprep.subr.mxu0 0.0
  %94 = vmatpush1.xpose.msra.mxu0 0.0
  %95 = vmatprep.subr.mxu0 0.0
  %96 = vmatpush1.xpose.msra.mxu0 0.0
  %97 = vmatprep.subr.mxu0 0.0
  %98 = vmatpush1.xpose.msra.mxu0 0.0
  %99 = vmatprep.subr.mxu0 0.0
  %100 = vmatpush1.xpose.msra.mxu0 0.0
  %101 = vmatprep.subr.mxu0 0.0
  %102 = vmatpush1.xpose.msra.mxu0 0.0
  %103 = vmatprep.mubr.f32.mxu0 0.0
  %104 = vmatmul.mubr.f32.gmra.mrb[0].mxu0 %v14
  %v105 = vpop.f32.mrb[0].mxu0
  %v106 = vadd.f32 %v37, %v105
  %v107 = vpop.f32.mrb[0].mxu0
  %108 = vmatprep.mubr.f32.mxu0 0.0
  %109 = vmatmul.mubr.f32.gmra.mrb[0].mxu0 %v15
  %v110 = vpop.f32.mrb[0].mxu0
  %v111 = vadd.f32 %v37, %v110
  %v112 = vpop.f32.mrb[0].mxu0
  %113 = vdwg.mxu0
  %114 = vst [vmem:[%s3] sm:$0xff] %v106
  %115 = vst [vmem:[%s3 + $0x8] sm:$0xff] %v111
  // Predicated region
  $region14: #{linear_pallas.1} parent=0 // pred_check
    _
  $region15: #{linear_pallas.1} parent=0 // pred_check_branch
    %117 = sbr.rel (0) target = $region17
  $region16: #{linear_pallas.1} parent=0 // pred_region
    _
  $region17: #{linear_pallas.1} parent=0 // pred_fallthru
    _
  // Predicated region
  $region18: #{linear_pallas.1} parent=0 // pred_check
    _
  $region19: #{linear_pallas.1} parent=0 // pred_check_branch
    %119 = sbr.rel (0) target = $region21
  $region20: #{linear_pallas.1} parent=0 // pred_region
    _
  $region21: #{linear_pallas.1} parent=0 // pred_fallthru
    _

</llo_original>
